<compile_context>
chip_gen: v7x
topology: tpu7x:2x2x1
jax: 0.10.0
libtpu: 0.0.40
codegen_flags: <defaults>
</compile_context>

<pallas_src>
import functools

import jax
import jax.numpy as jnp
from jax.experimental import pallas as pl
from jax.experimental.pallas import tpu as pltpu

_MAX_LANE = 1024                 # lane-dense last dim (multiple of 128)
_TARGET_TILE_BYTES = 4 << 20     # ~4 MiB per tile; 2 bufs x (in+out) = 16 MiB
_VMEM_LIMIT_BYTES = 32 << 20     # safe: v5e/v6e phys VMEM 128 MiB, v7x 64 MiB


def _react_kernel(x_ref, o_ref, *, c):
    # Elementwise clip-from-above: out = min(x, c). (clip(max=c): no lower bound.)
    o_ref[...] = jnp.minimum(x_ref[...], jnp.asarray(c, dtype=x_ref.dtype))


def _round_up(a: int, b: int) -> int:
    return ((a + b - 1) // b) * b


def _round_down(a: int, b: int) -> int:
    return (a // b) * b


def _choose_lane(total: int, sub_align: int):
    """Pick a lane width (multiple of 128, <= _MAX_LANE).

    Prefer a lane that exactly divides `total` (no pad/slice HBM copies),
    ideally also giving rows % sub_align == 0 (no masked sublanes).
    """
    candidates = list(range(_MAX_LANE, 0, -128))
    for lane in candidates:                      # pass 1: no pad, aligned rows
        if total % lane == 0 and (total // lane) % sub_align == 0:
            return lane
    for lane in candidates:                      # pass 2: no pad
        if total % lane == 0:
            return lane
    # pass 3: padding unavoidable; keep >= sub_align rows to bound the pad.
    return min(_MAX_LANE, max(128, _round_down(max(total // sub_align, 128), 128)))


@functools.partial(jax.jit, static_argnames=("c",))
def react(x: jax.Array, c: float = 1.0) -> jax.Array:
    """Pallas implementation of ReAct.forward: x.clip(max=c)."""
    orig_shape = x.shape
    dtype = x.dtype
    total = x.size
    if total == 0:
        return x

    # Sublane alignment by dtype packing: 8 (f32), 16 (bf16), 32 (int8).
    sub_align = max(8, 32 // dtype.itemsize)

    lane = _choose_lane(total, sub_align)
    rows = pl.cdiv(total, lane)
    padded = rows * lane

    flat = x.reshape(-1)
    if padded != total:
        flat = jnp.pad(flat, (0, padded - total))
    x2d = flat.reshape(rows, lane)

    # Tile height from a byte budget (dtype-independent ~4 MiB per step).
    tm_budget = max(
        sub_align,
        _round_down(_TARGET_TILE_BYTES // (lane * dtype.itemsize), sub_align),
    )
    if rows <= tm_budget:
        if rows >= 2 * sub_align:
            # Split into 2 blocks so v7x's 2 TensorCores both get work.
            tm = _round_up(pl.cdiv(rows, 2), sub_align)
        else:
            tm = rows  # equals the full dim -> always a legal block shape
    else:
        tm = tm_budget

    grid = (pl.cdiv(rows, tm),)
    kernel = functools.partial(_react_kernel, c=c)

    out2d = pl.pallas_call(
        kernel,
        out_shape=jax.ShapeDtypeStruct((rows, lane), dtype),
        grid_spec=pl.GridSpec(
            grid=grid,
            in_specs=[pl.BlockSpec((tm, lane), lambda i: (i, 0))],
            out_specs=pl.BlockSpec((tm, lane), lambda i: (i, 0)),
        ),
        compiler_params=pltpu.CompilerParams(
            dimension_semantics=("parallel",),
            vmem_limit_bytes=_VMEM_LIMIT_BYTES,
        ),
    )(x2d)

    out = out2d.reshape(-1)
    if padded != total:
        out = out[:total]
    return out.reshape(orig_shape)


if __name__ == "__main__":
    key = jax.random.PRNGKey(0)

    # Small NCHW input consistent with a conv-net feature map.
    x = jax.random.normal(key, (2, 4, 16, 16), dtype=jnp.float32) * 2.0
    c = 1.0
    ref = jnp.minimum(x, c)
    out = jax.block_until_ready(react(x, c=c))
    assert out.shape == x.shape and out.dtype == x.dtype
    assert jnp.allclose(out, ref), "mismatch vs f32 reference"

    # Second check: bf16, larger map -> multi-block grid, no-pad lane path,
    # masked partial final tile (784 rows, tm=400).
    k2 = jax.random.PRNGKey(1)
    xb = (jax.random.normal(k2, (4, 64, 56, 56), dtype=jnp.float32) * 2.0).astype(jnp.bfloat16)
    refb = jnp.minimum(xb, jnp.bfloat16(c))
    outb = jax.block_until_ready(react(xb, c=c))
    assert outb.shape == xb.shape and outb.dtype == xb.dtype
    assert jnp.array_equal(outb, refb), "mismatch vs bf16 reference"

    # Third check: odd element count that forces the pad fallback path.
    k3 = jax.random.PRNGKey(2)
    xo = jax.random.normal(k3, (3, 5, 7, 11), dtype=jnp.float32) * 2.0
    refo = jnp.minimum(xo, c)
    outo = jax.block_until_ready(react(xo, c=c))
    assert outo.shape == xo.shape and jnp.allclose(outo, refo), "mismatch on pad path"

    print("KERNEL_OK")
</pallas_src>

<mosaic_0001>
module attributes {stable_mosaic.version = 11 : i64} {
  func.func @_react_kernel(%arg0: i32, %arg1: memref<8x256xf32, #tpu.memory_space<vmem>>, %arg2: memref<8x256xf32, #tpu.memory_space<vmem>>) attributes {dimension_semantics = [#tpu.dimension_semantics<parallel>], iteration_bounds = array<i64: 1>, scalar_prefetch = 0 : i64, scratch_operands = 0 : i64, tpu.core_type = #tpu.core_type<tc>, window_params = [{transform_indices = @transform_0, window_bounds = array<i64: 8, 256>}, {transform_indices = @transform_1, window_bounds = array<i64: 8, 256>}]} {
    %c0 = arith.constant 0 : index
    %c0_0 = arith.constant 0 : index
    %0 = vector.load %arg1[%c0, %c0_0] : memref<8x256xf32, #tpu.memory_space<vmem>>, vector<8x256xf32>
    %cst = arith.constant 1.000000e+00 : f32
    %1 = vector.broadcast %cst : f32 to vector<8x256xf32>
    %2 = arith.minimumf %0, %1 : vector<8x256xf32>
    %c0_1 = arith.constant 0 : index
    %c0_2 = arith.constant 0 : index
    %3 = vector.load %arg2[%c0_1, %c0_2] : memref<8x256xf32, #tpu.memory_space<vmem>>, vector<8x256xf32>
    tpu.vector_store %arg2[%c0_1, %c0_2], %2 {strides = array<i32>} : memref<8x256xf32, #tpu.memory_space<vmem>>, vector<8x256xf32>,
    return
  }
  func.func @transform_0(%arg0: i32) -> (i32, i32) {
    %c0_i32 = arith.constant 0 : i32
    %c0_i32_0 = arith.constant 0 : i32
    return %arg0, %c0_i32 : i32, i32
  }
  func.func @transform_1(%arg0: i32) -> (i32, i32) {
    %c0_i32 = arith.constant 0 : i32
    %c0_i32_0 = arith.constant 0 : i32
    return %arg0, %c0_i32 : i32, i32
  }
}

</mosaic_0001>

<llo_original>
// kernel: react.1
$region0: #{react.1}
  #allocation0 [shape = 'u32[]', space=smem, size = 0x4, offset = 0x4, fixed_abs, tag = 'smem constant byte address 0x4 - core index']
  #allocation1 [shape = 'u32[144,128]{1,0:T(1,128)}', space=vmem, size = 0x12000, scoped, tag = 'internal scratch']
  %s0 = inlined_call_operand.vmem [shape: f32[8,256], index: 0, kind: input, shape index: {}]
  %s1 = inlined_call_operand.vmem [shape: f32[8,256], index: 1, kind: output, shape index: {}]
  %s2 = sld [smem:[#allocation0]]
  $region14: #{react.1} parent=0
    _
  %s4 = ssub.s32 1, %s2
  %s5 = scalar_select 0, %s4, %s2
  // Predicated region
  $region2: #{react.1} parent=0 // pred_check
    _
  $region3: #{react.1} parent=0 // pred_check_branch
    %7 = sbr.rel (0) target = $region5
  $region4: #{react.1} parent=0 // pred_region
    _
  $region5: #{react.1} parent=0 // pred_fallthru
    _
  %v8 = vld [vmem:[%s0] sm:$0xff]
  %v9 = vld [vmem:[%s0 + $0x8] sm:$0xff]
  %v10 = vmin.f32 %v8, 1.0
  %v11 = vmin.f32 %v9, 1.0
  %12 = vst [vmem:[%s1] sm:$0xff] %v10
  %13 = vst [vmem:[%s1 + $0x8] sm:$0xff] %v11
  // Predicated region
  $region6: #{react.1} parent=0 // pred_check
    _
  $region7: #{react.1} parent=0 // pred_check_branch
    %15 = sbr.rel (0) target = $region9
  $region8: #{react.1} parent=0 // pred_region
    _
  $region9: #{react.1} parent=0 // pred_fallthru
    _
  // Predicated region
  $region10: #{react.1} parent=0 // pred_check
    _
  $region11: #{react.1} parent=0 // pred_check_branch
    %17 = sbr.rel (0) target = $region13
  $region12: #{react.1} parent=0 // pred_region
    _
  $region13: #{react.1} parent=0 // pred_fallthru
    _

</llo_original>
